<compile_context>
chip_gen: v5e
topology: v5e:2x2
jax: 0.10.0
libtpu: 0.0.40
codegen_flags: <defaults>
</compile_context>

<pallas_src>
import functools
import math

import jax
import jax.numpy as jnp
from jax.experimental import pallas as pl
from jax.experimental.pallas import tpu as pltpu

NUM_CORES = 2  # row-split across TensorCores on v7x; harmless (sequential) on v5e/v6e


def _label_smoothing_kernel(x_ref, tgt_ref, out_ref, *, padding_idx,
                            smooth_val, confidence, c_row):
    i = pl.program_id(1)

    # The output block index is constant along the "arbitrary" axis, so it stays
    # resident in VMEM and acts as a per-row accumulator.
    @pl.when(i == 0)
    def _init():
        out_ref[...] = jnp.zeros_like(out_ref)

    x = x_ref[...].astype(jnp.float32)            # (row_tile, V) log-probs
    tgt = tgt_ref[...]                            # (row_tile, 1) int32

    # Smoothed weights before padding-column / padding-row zeroing:
    #   w[n, v] = confidence if v == tgt[n] else smooth_val
    col = jax.lax.broadcasted_iota(jnp.int32, x.shape, 1)
    w = jnp.where(col == tgt, jnp.float32(confidence), jnp.float32(smooth_val))
    rowdot = jnp.sum(w * x, axis=-1, keepdims=True)          # (row_tile, 1)

    # Closed form per row (no per-element log):
    #   non-pad row: KL_n = c_row - sum_v td[n,v]*x[n,v]
    #                     = c_row - (rowdot - smooth_val * x[n, padding_idx])
    #   pad row    : KL_n = 0
    x_pad = x[:, padding_idx:padding_idx + 1]                # (row_tile, 1)
    row_kl = jnp.float32(c_row) - rowdot + jnp.float32(smooth_val) * x_pad
    row_kl = jnp.where(tgt != padding_idx, row_kl, jnp.float32(0.0))

    out_ref[...] += row_kl


def _choose_row_tile(N, V, num_cores, itemsize, block_bytes=8 * 1024 * 1024):
    """Largest row tile (multiple of 8) whose x-block fits the byte budget, but no
    larger than each core's share of the rows."""
    by_budget = max(8, (block_bytes // max(1, V * itemsize)) // 8 * 8)
    per_core = -(-N // num_cores)                 # ceil(N / num_cores)
    per_core = max(8, ((per_core + 7) // 8) * 8)  # round up to a multiple of 8
    return max(8, min(by_budget, per_core, 4096))
    # TODO(synk): for very large vocabularies (V >~ 128k) add a second grid axis over
    # V (tile ~2048-8192 lanes) instead of shrinking the row tile.


def label_smoothing_loss(x, target, *, size, padding_idx, smoothing,
                         row_tile=None):
    """x: (N, size) float log-probs, target: (N,) int class ids. Returns scalar loss."""
    N, V = x.shape
    assert V == size
    assert size > 2, "smoothing/(size-2) requires size > 2 (same as the PyTorch module)"
    confidence = 1.0 - smoothing
    smooth_val = smoothing / (size - 2)

    # sum_v td*log(td) for a non-padding row is a constant (0*log(0) := 0):
    #   confidence*log(confidence) + (size-2)*smooth_val*log(smooth_val)
    c_row = 0.0
    if confidence > 0.0:
        c_row += confidence * math.log(confidence)
    if smooth_val > 0.0:
        c_row += smoothing * math.log(smooth_val)

    itemsize = jnp.dtype(x.dtype).itemsize
    if row_tile is None:
        row_tile = _choose_row_tile(N, V, NUM_CORES, itemsize)
    assert row_tile % 8 == 0

    # Pad rows so N is a multiple of NUM_CORES * row_tile.  Padded rows get
    # target == padding_idx, so they contribute exactly 0 to the loss.
    chunk = NUM_CORES * row_tile
    n_extra = (-N) % chunk
    if n_extra:
        x = jnp.concatenate([x, jnp.zeros((n_extra, V), x.dtype)], axis=0)
        target = jnp.concatenate(
            [target.astype(jnp.int32),
             jnp.full((n_extra,), padding_idx, jnp.int32)], axis=0)
    n_total = N + n_extra
    tgt2d = target.reshape(n_total, 1).astype(jnp.int32)
    steps = n_total // chunk

    kernel = functools.partial(
        _label_smoothing_kernel,
        padding_idx=padding_idx, smooth_val=smooth_val,
        confidence=confidence, c_row=c_row)

    # Estimated VMEM: 2 pipeline buffers each for the x and target blocks plus the
    # resident output block.  Raise the scoped limit only when actually needed so
    # small problems keep the (safe) per-chip defaults.
    est_vmem = 2 * row_tile * V * itemsize + 2 * row_tile * 4 + row_tile * 4
    compiler_kwargs = dict(dimension_semantics=("parallel", "arbitrary"))
    if est_vmem > 12 * 1024 * 1024:
        compiler_kwargs["vmem_limit_bytes"] = 32 * 1024 * 1024  # fits v5e/v6e/v7x

    out = pl.pallas_call(
        kernel,
        out_shape=jax.ShapeDtypeStruct((NUM_CORES * row_tile, 1), jnp.float32),
        grid_spec=pltpu.PrefetchScalarGridSpec(
            num_scalar_prefetch=0,
            grid=(NUM_CORES, steps),
            in_specs=[
                pl.BlockSpec((row_tile, V), lambda c, i, s=steps: (c * s + i, 0)),
                pl.BlockSpec((row_tile, 1), lambda c, i, s=steps: (c * s + i, 0)),
            ],
            out_specs=pl.BlockSpec((row_tile, 1), lambda c, i: (c, 0)),
        ),
        compiler_params=pltpu.CompilerParams(**compiler_kwargs),
    )(x, tgt2d)
    # Final tiny reduction of the per-row partial sums.
    return jnp.sum(out)


def _reference(x, target, *, size, padding_idx, smoothing):
    """Direct transcription of the PyTorch module (used only for validation)."""
    confidence = 1.0 - smoothing
    N, V = x.shape
    col = jnp.arange(V)[None, :]
    tgt = target[:, None]
    td = jnp.full((N, V), smoothing / (size - 2), jnp.float32)
    td = jnp.where(col == tgt, confidence, td)
    td = jnp.where(col == padding_idx, 0.0, td)
    td = jnp.where(tgt == padding_idx, 0.0, td)
    kl = jnp.where(td > 0.0, td * (jnp.log(td) - x), 0.0)
    return jnp.sum(kl)


if __name__ == "__main__":
    key = jax.random.PRNGKey(0)
    N, SIZE = 16, 32          # 16 tokens, vocab "size" 32
    PAD = 0
    SMOOTH = 0.1

    kx, kt = jax.random.split(key)
    logits = jax.random.normal(kx, (N, SIZE), dtype=jnp.float32)
    x = jax.nn.log_softmax(logits, axis=-1)          # module expects log-probs
    target = jax.random.randint(kt, (N,), 0, SIZE, dtype=jnp.int32)
    # include a couple of padding tokens to exercise the row-masking path
    target = target.at[3].set(PAD).at[7].set(PAD)

    loss = label_smoothing_loss(x, target, size=SIZE, padding_idx=PAD,
                                smoothing=SMOOTH)
    loss = jax.block_until_ready(loss)

    ref = _reference(x, target, size=SIZE, padding_idx=PAD, smoothing=SMOOTH)
    assert jnp.allclose(loss, ref, rtol=1e-4, atol=1e-4), (loss, ref)

    print("KERNEL_OK")
</pallas_src>

<mosaic_0001>
module attributes {stable_mosaic.version = 11 : i64} {
  func.func @_label_smoothing_kernel(%arg0: i32, %arg1: i32, %arg2: memref<8x32xf32, #tpu.memory_space<vmem>>, %arg3: memref<8x1xi32, #tpu.memory_space<vmem>>, %arg4: memref<8x1xf32, #tpu.memory_space<vmem>>) attributes {dimension_semantics = [#tpu.dimension_semantics<parallel>, #tpu.dimension_semantics<arbitrary>], iteration_bounds = array<i64: 2, 1>, scalar_prefetch = 0 : i64, scratch_operands = 0 : i64, tpu.core_type = #tpu.core_type<tc>, window_params = [{transform_indices = @transform_0, window_bounds = array<i64: 8, 32>}, {transform_indices = @transform_1, window_bounds = array<i64: 8, 1>}, {transform_indices = @transform_2, window_bounds = array<i64: 8, 1>}]} {
    %c0_i32 = arith.constant 0 : i32
    %0 = arith.cmpi eq, %arg1, %c0_i32 : i32
    %1 = arith.extui %0 : i1 to i32
    %c0_i32_0 = arith.constant 0 : i32
    %2 = arith.cmpi ne, %1, %c0_i32_0 : i32
    scf.if %2 {
      %cst_14 = arith.constant 0.000000e+00 : f32
      %27 = vector.broadcast %cst_14 : f32 to vector<8x1xf32>
      %c0_15 = arith.constant 0 : index
      %c0_16 = arith.constant 0 : index
      %28 = vector.load %arg4[%c0_15, %c0_16] : memref<8x1xf32, #tpu.memory_space<vmem>>, vector<8x1xf32>
      tpu.vector_store %arg4[%c0_15, %c0_16], %27 {strides = array<i32>} : memref<8x1xf32, #tpu.memory_space<vmem>>, vector<8x1xf32>,
    } else {
    }
    %c0 = arith.constant 0 : index
    %c0_1 = arith.constant 0 : index
    %3 = vector.load %arg2[%c0, %c0_1] : memref<8x32xf32, #tpu.memory_space<vmem>>, vector<8x32xf32>
    %c0_2 = arith.constant 0 : index
    %c0_3 = arith.constant 0 : index
    %4 = vector.load %arg3[%c0_2, %c0_3] : memref<8x1xi32, #tpu.memory_space<vmem>>, vector<8x1xi32>
    %5 = tpu.iota {dimensions = array<i32: 1>} : vector<8x32xi32>
    %6 = vector.broadcast %4 : vector<8x1xi32> to vector<8x32xi32>
    %7 = arith.cmpi eq, %5, %6 : vector<8x32xi32>
    %cst = arith.constant 0.899999976 : f32
    %cst_4 = arith.constant 0.00333333341 : f32
    %8 = vector.broadcast %cst : f32 to vector<8x32xf32>
    %9 = vector.broadcast %cst_4 : f32 to vector<8x32xf32>
    %10 = arith.select %7, %8, %9 : vector<8x32xi1>, vector<8x32xf32>
    %11 = arith.mulf %10, %3 : vector<8x32xf32>
    %cst_5 = arith.constant dense<0.000000e+00> : vector<8xf32>
    %12 = vector.multi_reduction <add>, %11, %cst_5 [1] : vector<8x32xf32> to vector<8xf32>
    %13 = vector.shape_cast %12 : vector<8xf32> to vector<8x1xf32>
    %14 = vector.extract_strided_slice %3 {offsets = [0, 0], sizes = [8, 1], strides = [1, 1]} : vector<8x32xf32> to vector<8x1xf32>
    %cst_6 = arith.constant -0.665202737 : f32
    %15 = vector.broadcast %cst_6 : f32 to vector<8x1xf32>
    %16 = arith.subf %15, %13 : vector<8x1xf32>
    %cst_7 = arith.constant 0.00333333341 : f32
    %17 = vector.broadcast %cst_7 : f32 to vector<8x1xf32>
    %18 = arith.mulf %17, %14 : vector<8x1xf32>
    %19 = arith.addf %16, %18 : vector<8x1xf32>
    %c0_i32_8 = arith.constant 0 : i32
    %20 = vector.broadcast %c0_i32_8 : i32 to vector<8x1xi32>
    %21 = arith.cmpi ne, %4, %20 : vector<8x1xi32>
    %cst_9 = arith.constant 0.000000e+00 : f32
    %22 = vector.broadcast %cst_9 : f32 to vector<8x1xf32>
    %23 = arith.select %21, %19, %22 : vector<8x1xi1>, vector<8x1xf32>
    %c0_10 = arith.constant 0 : index
    %c0_11 = arith.constant 0 : index
    %24 = vector.load %arg4[%c0_10, %c0_11] : memref<8x1xf32, #tpu.memory_space<vmem>>, vector<8x1xf32>
    %25 = arith.addf %24, %23 : vector<8x1xf32>
    %c0_12 = arith.constant 0 : index
    %c0_13 = arith.constant 0 : index
    %26 = vector.load %arg4[%c0_12, %c0_13] : memref<8x1xf32, #tpu.memory_space<vmem>>, vector<8x1xf32>
    tpu.vector_store %arg4[%c0_12, %c0_13], %25 {strides = array<i32>} : memref<8x1xf32, #tpu.memory_space<vmem>>, vector<8x1xf32>,
    return
  }
  func.func @transform_0(%arg0: i32, %arg1: i32) -> (i32, i32) {
    %c1_i32 = arith.constant 1 : i32
    %0 = arith.muli %arg0, %c1_i32 : i32
    %1 = arith.addi %0, %arg1 : i32
    %c0_i32 = arith.constant 0 : i32
    %c0_i32_0 = arith.constant 0 : i32
    return %1, %c0_i32 : i32, i32
  }
  func.func @transform_1(%arg0: i32, %arg1: i32) -> (i32, i32) {
    %c1_i32 = arith.constant 1 : i32
    %0 = arith.muli %arg0, %c1_i32 : i32
    %1 = arith.addi %0, %arg1 : i32
    %c0_i32 = arith.constant 0 : i32
    %c0_i32_0 = arith.constant 0 : i32
    return %1, %c0_i32 : i32, i32
  }
  func.func @transform_2(%arg0: i32, %arg1: i32) -> (i32, i32) {
    %c0_i32 = arith.constant 0 : i32
    %c0_i32_0 = arith.constant 0 : i32
    return %arg0, %c0_i32 : i32, i32
  }
}

</mosaic_0001>

<llo_original>
// kernel: tpu_custom_call.1
$region0: #{tpu_custom_call.1}
  #allocation0 [shape = 'u32[]', space=smem, size = 0x4, offset = 0x4, fixed_abs, tag = 'smem constant byte address 0x4 - core index']
  #allocation1 [shape = 'u32[72,128]{1,0:T(1,128)}', space=vmem, size = 0x9000, scoped, tag = 'internal scratch']
  %s0 = inlined_call_operand.vmem [shape: f32[16,32], index: 0, kind: input, shape index: {}]
  %s1 = inlined_call_operand.vmem [shape: s32[16,1], index: 1, kind: input, shape index: {}]
  %s2 = inlined_call_operand.vmem [shape: f32[16,1], index: 2, kind: output, shape index: {}]
  %s3 = sld [smem:[#allocation0]]
  $region45: #{tpu_custom_call.1} parent=0
    _
  %s5 = ssub.s32 1, %s3
  %s6 = scalar_select 0, %s5, %s3
  loop: start=0, step=1, limit=4
  $region2: #{tpu_custom_call.1} parent=0 // loop_pre_header
    _
  $region3: #{tpu_custom_call.1} parent=0 // loop_header
    %s8 = sphi 0, %s12
    %p9 = scmp.ge.s32.totalorder %s8, 4
    %s15 = sphi 0, %s27
    %s16 = sphi 0, %s23
    %s17 = sphi 0, %s15
    %s18 = sphi 0, %s16
    %s19 = sphi 0, %s17
    %s20 = sphi 0, %s18
    %s32 = sphi 0, %s34
    %s35 = sphi 0, %s32
    %s36 = sphi 0, %s35
    %s52 = sphi 0, %s36
    %s60 = sphi 0, %s62
    %s63 = sphi 0, %s60
    %s64 = sphi 0, %s63
    %s80 = sphi 0, %s64
    %s86 = sphi 0, %s88
    %s89 = sphi 0, %s86
    %s90 = sphi 0, %s89
    %s106 = sphi 0, %s90
  $region4: #{tpu_custom_call.1} parent=0 // loop_header_branch
    %11 = sbr.rel (%p9) target = $region8
  $region5: #{tpu_custom_call.1} parent=0 // loop_body
    %s13 = ssub.s32 %s8, 1
    %s14 = ssub.s32 %s8, 2
    %s21 = sadd.s32 1, %s16
    %p22 = scmp.ge.s32.totalorder %s21, 1
    %s23 = scalar_select %p22, 0, %s21
    %s24 = sadd.s32 1, %s15
    %s25 = scalar_select %p22, %s24, %s15
    %p26 = scmp.ge.s32.totalorder %s25, 2
    %s27 = scalar_select %p26, 0, %s25
    %s28 = sadd.s32 %s15, %s16
    %s29 = sadd.s32 %s27, %s23
    %s30 = ssub.s32 %s28, %s29
    %p31 = scmp.eq.s32.totalorder %s30, 0
    %s33 = sadd.s32 %s32, 1
    %s34 = scalar_select %p31, %s32, %s33
    %p37 = pneg %p31
    %p38 = scmp.eq.s32.totalorder %s8, 1
    %p39 = por %p37, %p38
    %p40 = scmp.ne.s32.totalorder %s32, %s35
    %p41 = scmp.eq.s32.totalorder %s8, 0
    %p42 = por %p40, %p41
    %p43 = scmp.ne.s32.totalorder %s32, %s35
    %p44 = scmp.eq.s32.totalorder %s13, 1
    %p45 = por %p43, %p44
    %p46 = scmp.ne.s32.totalorder %s35, %s36
    %p47 = scmp.eq.s32.totalorder %s13, 0
    %p48 = por %p46, %p47
    %p49 = scmp.ne.s32.totalorder %s35, %s36
    %p50 = scmp.eq.s32.totalorder %s14, 1
    %p51 = por %p49, %p50
    %p53 = scmp.ne.s32.totalorder %s36, %s52
    %p54 = scmp.eq.s32.totalorder %s14, 0
    %p55 = por %p53, %p54
    %s56 = sadd.s32 %s15, %s16
    %s57 = sadd.s32 %s27, %s23
    %s58 = ssub.s32 %s56, %s57
    %p59 = scmp.eq.s32.totalorder %s58, 0
    %s61 = sadd.s32 %s60, 1
    %s62 = scalar_select %p59, %s60, %s61
    %p65 = pneg %p59
    %p66 = scmp.eq.s32.totalorder %s8, 1
    %p67 = por %p65, %p66
    %p68 = scmp.ne.s32.totalorder %s60, %s63
    %p69 = scmp.eq.s32.totalorder %s8, 0
    %p70 = por %p68, %p69
    %p71 = scmp.ne.s32.totalorder %s60, %s63
    %p72 = scmp.eq.s32.totalorder %s13, 1
    %p73 = por %p71, %p72
    %p74 = scmp.ne.s32.totalorder %s63, %s64
    %p75 = scmp.eq.s32.totalorder %s13, 0
    %p76 = por %p74, %p75
    %p77 = scmp.ne.s32.totalorder %s63, %s64
    %p78 = scmp.eq.s32.totalorder %s14, 1
    %p79 = por %p77, %p78
    %p81 = scmp.ne.s32.totalorder %s64, %s80
    %p82 = scmp.eq.s32.totalorder %s14, 0
    %p83 = por %p81, %p82
    %s84 = ssub.s32 %s15, %s27
    %p85 = scmp.eq.s32.totalorder %s84, 0
    %s87 = sadd.s32 %s86, 1
    %s88 = scalar_select %p85, %s86, %s87
    %p91 = pneg %p85
    %p92 = scmp.eq.s32.totalorder %s8, 1
    %p93 = por %p91, %p92
    %p94 = scmp.ne.s32.totalorder %s86, %s89
    %p95 = scmp.eq.s32.totalorder %s8, 0
    %p96 = por %p94, %p95
    %p97 = scmp.ne.s32.totalorder %s86, %s89
    %p98 = scmp.eq.s32.totalorder %s13, 1
    %p99 = por %p97, %p98
    %p100 = scmp.ne.s32.totalorder %s89, %s90
    %p101 = scmp.eq.s32.totalorder %s13, 0
    %p102 = por %p100, %p101
    %p103 = scmp.ne.s32.totalorder %s89, %s90
    %p104 = scmp.eq.s32.totalorder %s14, 1
    %p105 = por %p103, %p104
    %p107 = scmp.ne.s32.totalorder %s90, %s106
    %p108 = scmp.eq.s32.totalorder %s14, 0
    %p109 = por %p107, %p108
    %p110 = scmp.le.s32.totalorder 1, %s8
    %p111 = scmp.lt.s32.totalorder %s8, 3
    %p112 = pnand %p110, %p111
    %p113 = pneg %p112
    // Predicated region
    $region9: #{tpu_custom_call.1} parent=5 // pred_check
      _
    $region10: #{tpu_custom_call.1} parent=5 // pred_check_branch
      %115 = sbr.rel (%p112) target = $region12
    $region11: #{tpu_custom_call.1} parent=5 // pred_region
      %s116 = ssub.s32 %s8, 1
    $region12: #{tpu_custom_call.1} parent=5 // pred_fallthru
      _
    %p117 = scmp.lt.s32.totalorder %s8, 2
    // Predicated region
    $region13: #{tpu_custom_call.1} parent=5 // pred_check
      %p118 = pneg %p117
    $region14: #{tpu_custom_call.1} parent=5 // pred_check_branch
      %120 = sbr.rel (%p118) target = $region16
    $region15: #{tpu_custom_call.1} parent=5 // pred_region
      // Predicated region
      $region17: #{tpu_custom_call.1} parent=15 // pred_check
        %p121 = pneg %p42
      $region18: #{tpu_custom_call.1} parent=15 // pred_check_branch
        %123 = sbr.rel (%p121) target = $region20
      $region19: #{tpu_custom_call.1} parent=15 // pred_region
        %s124 = sadd.s32 %s15, %s16
        %p125 = scmp.lt.s32.totalorder %s124, 1
        %s126 = scalar_select %p125, %s124, 1
        %s127 = smul.addr %s126, 8
        %s128 = scalar_lea.vmem %s0, %s127
        %s129 = sadd.s32 %s15, %s16
      $region20: #{tpu_custom_call.1} parent=15 // pred_fallthru
        _
      // Predicated region
      $region21: #{tpu_custom_call.1} parent=15 // pred_check
        %p130 = pneg %p70
      $region22: #{tpu_custom_call.1} parent=15 // pred_check_branch
        %132 = sbr.rel (%p130) target = $region24
      $region23: #{tpu_custom_call.1} parent=15 // pred_region
        %s133 = sadd.s32 %s15, %s16
        %p134 = scmp.lt.s32.totalorder %s133, 1
        %s135 = scalar_select %p134, %s133, 1
        %s136 = smul.addr %s135, 8
        %s137 = scalar_lea.vmem %s1, %s136
        %s138 = sadd.s32 %s15, %s16
      $region24: #{tpu_custom_call.1} parent=15 // pred_fallthru
        _
    $region16: #{tpu_custom_call.1} parent=5 // pred_fallthru
      _
    %p139 = scmp.le.s32.totalorder 1, %s8
    %p140 = scmp.lt.s32.totalorder %s8, 3
    %p141 = pnand %p139, %p140
    %p142 = pneg %p141
    // Predicated region
    $region25: #{tpu_custom_call.1} parent=5 // pred_check
      _
    $region26: #{tpu_custom_call.1} parent=5 // pred_check_branch
      %144 = sbr.rel (%p141) target = $region28
    $region27: #{tpu_custom_call.1} parent=5 // pred_region
      %s145 = ssub.s32 %s8, 1
      %s146 = sadd.s32 %s17, %s18
      %p147 = scmp.lt.s32.totalorder %s146, 1
      %s148 = scalar_select %p147, %s146, 1
      %s149 = smul.addr %s148, 8
      %s150 = scalar_lea.vmem %s0, %s149
      %p151 = pneg %p48
      %p152 = pneg %p45
      %s153 = sadd.s32 %s17, %s18
      %p154 = scmp.lt.s32.totalorder %s153, 1
      %s155 = scalar_select %p154, %s153, 1
      %s156 = smul.addr %s155, 8
      %s157 = scalar_lea.vmem %s1, %s156
      %p158 = pneg %p76
      %p159 = pneg %p73
      %p160 = pneg %p102
      %p161 = pneg %p99
      %p162 = scmp.lt.s32.totalorder %s17, 1
      %s163 = scalar_select %p162, %s17, 1
      %s164 = smul.addr %s163, 8
      %s165 = scalar_lea.vmem %s2, %s164
      %s166 = sadd.s32 %s17, %s18
      %p167 = scmp.lt.s32.totalorder %s166, 1
      %s168 = scalar_select %p167, %s166, 1
      %s169 = smul.addr %s168, 8
      %s170 = scalar_lea.vmem %s0, %s169
      %s171 = sadd.s32 %s17, %s18
      %s172 = sadd.s32 %s17, %s18
      %p173 = scmp.lt.s32.totalorder %s172, 1
      %s174 = scalar_select %p173, %s172, 1
      %s175 = smul.addr %s174, 8
      %s176 = scalar_lea.vmem %s1, %s175
      %s177 = sadd.s32 %s17, %s18
      %p178 = scmp.lt.s32.totalorder %s17, 1
      %s179 = scalar_select %p178, %s17, 1
      %s180 = smul.addr %s179, 8
      %s181 = scalar_lea.vmem %s2, %s180
      %p182 = scmp.eq.s32.totalorder %s18, 0
      // Predicated region
      $region29: #{tpu_custom_call.1} parent=27 // pred_check
        %p183 = pneg %p182
      $region30: #{tpu_custom_call.1} parent=27 // pred_check_branch
        %185 = sbr.rel (%p183) target = $region32
      $region31: #{tpu_custom_call.1} parent=27 // pred_region
        %vm186 = vcmask 7168
        %187 = vst.msk [vmem:[%s181] sm:$0xff] %vm186, 0.0
      $region32: #{tpu_custom_call.1} parent=27 // pred_fallthru
        _
      %v188 = vld [vmem:[%s170] sm:$0xff]
      %v189 = vld [vmem:[%s176] sm:$0xff]
      %v190 = vlaneseq
      %v191 = vand.u32 %v190, 127
      %192 = vset.pattern.permute.xlu0 0
      %193 = vperm.xlu0 %192, %v189
      %v194 = vpop.permute.xlu0 %193
      %vm195 = vcmp.eq.s32.totalorder %v191, %v194
      %v196 = vsel %vm195, 0.9, 0.0033333334
      %v197 = vmul.f32 %v196, %v188
      %vm198 = vcmask 261120
      %v199 = vsel %vm198, %v197, 0.0
      %200 = vadd.xlane.f32.xlu0 %v199
      %v201 = vpop.xlane.xlu0 %200
      %v202 = vsub.f32 -0.66520274, %v201
      %v203 = vmul.f32 %v188, 0.0033333334
      %v204 = vadd.f32 %v202, %v203
      %vm205 = vcmp.ne.s32.totalorder %v189, 0
      %v206 = vsel %vm205, %v204, 0.0
      %v207 = vld [vmem:[%s181] sm:$0xff]
      %v208 = vadd.f32 %v207, %v206
      %vm209 = vcmask 7168
      %210 = vst.msk [vmem:[%s181] sm:$0xff] %vm209, %v208
      %p211 = scmp.lt.s32.totalorder %s17, 1
      %s212 = scalar_select %p211, %s17, 1
      %s213 = smul.addr %s212, 8
      %s214 = scalar_lea.vmem %s2, %s213
      // Predicated region
      $region33: #{tpu_custom_call.1} parent=27 // pred_check
        %p215 = pneg %p99
      $region34: #{tpu_custom_call.1} parent=27 // pred_check_branch
        %217 = sbr.rel (%p215) target = $region36
      $region35: #{tpu_custom_call.1} parent=27 // pred_region
        _
      $region36: #{tpu_custom_call.1} parent=27 // pred_fallthru
        _
    $region28: #{tpu_custom_call.1} parent=5 // pred_fallthru
      _
    %p218 = scmp.le.s32.totalorder 2, %s8
    // Predicated region
    $region37: #{tpu_custom_call.1} parent=5 // pred_check
      %p219 = pneg %p218
    $region38: #{tpu_custom_call.1} parent=5 // pred_check_branch
      %221 = sbr.rel (%p219) target = $region40
    $region39: #{tpu_custom_call.1} parent=5 // pred_region
      %s222 = ssub.s32 %s8, 2
      // Predicated region
      $region41: #{tpu_custom_call.1} parent=39 // pred_check
        %p223 = pneg %p105
      $region42: #{tpu_custom_call.1} parent=39 // pred_check_branch
        %225 = sbr.rel (%p223) target = $region44
      $region43: #{tpu_custom_call.1} parent=39 // pred_region
        %p226 = scmp.lt.s32.totalorder %s19, 1
        %s227 = scalar_select %p226, %s19, 1
        %s228 = smul.addr %s227, 8
        %s229 = scalar_lea.vmem %s2, %s228
      $region44: #{tpu_custom_call.1} parent=39 // pred_fallthru
        _
    $region40: #{tpu_custom_call.1} parent=5 // pred_fallthru
      _
  $region6: #{tpu_custom_call.1} parent=0 // loop_footer
    %s12 = sadd.s32 1, %s8
  $region7: #{tpu_custom_call.1} parent=0 // loop_footer_branch
    %7 = sbr.rel target = $region3
  $region8: #{tpu_custom_call.1} parent=0 // loop_exit
    _

</llo_original>
